<compile_context>
chip_gen: v6e
topology: v6e:2x2x1
jax: 0.10.0
libtpu: 0.0.40
codegen_flags: <defaults>
</compile_context>

<pallas_src>
import functools

import jax
import jax.numpy as jnp
from jax import lax
from jax.experimental import pallas as pl
from jax.experimental.pallas import tpu as pltpu


_N_BLUR = 3  # the torch module always box-filters channels 0..2


def _conv_noise_kernel(xpad_ref, noise_ref, o_ref, *, conv_size, pad, H, W, C):
    inv_k2 = jnp.float32(1.0 / (conv_size * conv_size))

    xpad = xpad_ref[0].astype(jnp.float32)     # (C, H+2p, W+2p)
    noise = noise_ref[0].astype(jnp.float32)   # (C, H, W)

    # ---- separable box blur on channels [0, 3) ----
    xb = xpad[:_N_BLUR]                        # (3, H+2p, W+2p)
    tmp = xb[:, :, 0:W]
    for dw in range(1, conv_size):             # K-1 lane-shifted adds
        tmp = tmp + xb[:, :, dw:dw + W]        # (3, H+2p, W)
    acc = tmp[:, 0:H, :]
    for dh in range(1, conv_size):             # K-1 sublane-shifted adds
        acc = acc + tmp[:, dh:dh + H, :]       # (3, H, W)
    blurred = acc * inv_k2

    o_ref[0, 0:_N_BLUR] = jnp.clip(
        blurred + noise[:_N_BLUR], -0.999, 0.9999
    ).astype(o_ref.dtype)

    # ---- pass-through channels: noise + clamp only ----
    if C > _N_BLUR:                            # static Python branch
        rest = xpad[_N_BLUR:, pad:pad + H, pad:pad + W]
        o_ref[0, _N_BLUR:] = jnp.clip(
            rest + noise[_N_BLUR:], -0.999, 0.9999
        ).astype(o_ref.dtype)


def conv_noise(x, conv_size, noise_variance, key):
    """Pallas implementation of ConvNoise.forward."""
    N, C, H, W = x.shape
    assert C >= _N_BLUR, "module blurs channels 0..2, need at least 3 channels"
    assert conv_size % 2 == 1, (
        "conv_size must be odd for 'same'-shaped output (the torch module's "
        "in-place channel assignment requires it)")
    pad = conv_size // 2
    Hp, Wp = H + 2 * pad, W + 2 * pad

    # torch.randn_like(x) * noise_variance (drawn in the wrapper; see header).
    noise = (jax.random.normal(key, x.shape, dtype=jnp.float32)
             * jnp.float32(noise_variance)).astype(x.dtype)
    # Zero 'same' padding done once outside the kernel.
    x_pad = jnp.pad(x, ((0, 0), (0, 0), (pad, pad), (pad, pad)))

    kernel = functools.partial(
        _conv_noise_kernel, conv_size=conv_size, pad=pad, H=H, W=W, C=C)

    itemsize = jnp.dtype(x.dtype).itemsize
    cost = pl.CostEstimate(
        flops=int(N * _N_BLUR * H * W * (2 * conv_size + 2) + 3 * N * C * H * W),
        transcendentals=0,
        bytes_accessed=int((x_pad.size + 2 * x.size) * itemsize))

    return pl.pallas_call(
        kernel,
        out_shape=jax.ShapeDtypeStruct(x.shape, x.dtype),
        grid=(N,),
        in_specs=[
            pl.BlockSpec((1, C, Hp, Wp), lambda n: (n, 0, 0, 0)),
            pl.BlockSpec((1, C, H, W), lambda n: (n, 0, 0, 0)),
        ],
        out_specs=pl.BlockSpec((1, C, H, W), lambda n: (n, 0, 0, 0)),
        compiler_params=pltpu.CompilerParams(
            dimension_semantics=("parallel",)),
        cost_estimate=cost,
    )(x_pad, noise)


if __name__ == "__main__":
    key = jax.random.PRNGKey(0)
    kx, kn = jax.random.split(key)

    N, C, H, W = 2, 4, 16, 16
    conv_size = 3
    noise_variance = 0.05

    x = jax.random.normal(kx, (N, C, H, W), dtype=jnp.float32)

    y = conv_noise(x, conv_size, noise_variance, kn)
    y = jax.block_until_ready(y)

    # ---- pure-JAX reference with identical semantics / identical noise ----
    pad = conv_size // 2
    noise = (jax.random.normal(kn, x.shape, dtype=jnp.float32)
             * jnp.float32(noise_variance))
    eps = jnp.ones((1, 1, conv_size, conv_size), jnp.float32) / (conv_size ** 2)
    blurred = lax.conv_general_dilated(
        x[:, :_N_BLUR].reshape(N * _N_BLUR, 1, H, W), eps,
        window_strides=(1, 1), padding=[(pad, pad), (pad, pad)],
        dimension_numbers=("NCHW", "OIHW", "NCHW"),
    ).reshape(N, _N_BLUR, H, W)
    ref = jnp.concatenate([blurred, x[:, _N_BLUR:]], axis=1)
    ref = jnp.clip(ref + noise, -0.999, 0.9999)

    assert y.shape == x.shape and y.dtype == x.dtype
    err = float(jnp.max(jnp.abs(y - ref)))
    assert jnp.allclose(y, ref, atol=1e-5, rtol=1e-5), f"max abs err {err}"
    print("KERNEL_OK")
</pallas_src>

<mosaic_0001>
module attributes {stable_mosaic.version = 11 : i64} {
  func.func @_conv_noise_kernel(%arg0: i32, %arg1: memref<1x4x18x18xf32, #tpu.memory_space<vmem>>, %arg2: memref<1x4x16x16xf32, #tpu.memory_space<vmem>>, %arg3: memref<1x4x16x16xf32, #tpu.memory_space<vmem>>) attributes {dimension_semantics = [#tpu.dimension_semantics<parallel>], iteration_bounds = array<i64: 2>, scalar_prefetch = 0 : i64, scratch_operands = 0 : i64, tpu.core_type = #tpu.core_type<tc>, window_params = [{transform_indices = @transform_0, window_bounds = array<i64: 1, 4, 18, 18>}, {transform_indices = @transform_1, window_bounds = array<i64: 1, 4, 16, 16>}, {transform_indices = @transform_2, window_bounds = array<i64: 1, 4, 16, 16>}]} {
    %c0 = arith.constant 0 : index
    %c0_0 = arith.constant 0 : index
    %c0_1 = arith.constant 0 : index
    %c0_2 = arith.constant 0 : index
    %0 = vector.load %arg1[%c0, %c0_0, %c0_1, %c0_2] : memref<1x4x18x18xf32, #tpu.memory_space<vmem>>, vector<1x4x18x18xf32>
    %1 = vector.shape_cast %0 : vector<1x4x18x18xf32> to vector<4x18x18xf32>
    %c0_3 = arith.constant 0 : index
    %c0_4 = arith.constant 0 : index
    %c0_5 = arith.constant 0 : index
    %c0_6 = arith.constant 0 : index
    %2 = vector.load %arg2[%c0_3, %c0_4, %c0_5, %c0_6] : memref<1x4x16x16xf32, #tpu.memory_space<vmem>>, vector<1x4x16x16xf32>
    %3 = vector.shape_cast %2 : vector<1x4x16x16xf32> to vector<4x16x16xf32>
    %4 = vector.extract_strided_slice %1 {offsets = [0, 0, 0], sizes = [3, 18, 18], strides = [1, 1, 1]} : vector<4x18x18xf32> to vector<3x18x18xf32>
    %5 = vector.extract_strided_slice %4 {offsets = [0, 0, 0], sizes = [3, 18, 16], strides = [1, 1, 1]} : vector<3x18x18xf32> to vector<3x18x16xf32>
    %6 = vector.extract_strided_slice %4 {offsets = [0, 0, 1], sizes = [3, 18, 16], strides = [1, 1, 1]} : vector<3x18x18xf32> to vector<3x18x16xf32>
    %7 = arith.addf %5, %6 : vector<3x18x16xf32>
    %8 = vector.extract_strided_slice %4 {offsets = [0, 0, 2], sizes = [3, 18, 16], strides = [1, 1, 1]} : vector<3x18x18xf32> to vector<3x18x16xf32>
    %9 = arith.addf %7, %8 : vector<3x18x16xf32>
    %10 = vector.extract_strided_slice %9 {offsets = [0, 0, 0], sizes = [3, 16, 16], strides = [1, 1, 1]} : vector<3x18x16xf32> to vector<3x16x16xf32>
    %11 = vector.extract_strided_slice %9 {offsets = [0, 1, 0], sizes = [3, 16, 16], strides = [1, 1, 1]} : vector<3x18x16xf32> to vector<3x16x16xf32>
    %12 = arith.addf %10, %11 : vector<3x16x16xf32>
    %13 = vector.extract_strided_slice %9 {offsets = [0, 2, 0], sizes = [3, 16, 16], strides = [1, 1, 1]} : vector<3x18x16xf32> to vector<3x16x16xf32>
    %14 = arith.addf %12, %13 : vector<3x16x16xf32>
    %cst = arith.constant 0.111111112 : f32
    %15 = vector.broadcast %cst : f32 to vector<3x16x16xf32>
    %16 = arith.mulf %14, %15 : vector<3x16x16xf32>
    %17 = vector.extract_strided_slice %3 {offsets = [0, 0, 0], sizes = [3, 16, 16], strides = [1, 1, 1]} : vector<4x16x16xf32> to vector<3x16x16xf32>
    %18 = arith.addf %16, %17 : vector<3x16x16xf32>
    %cst_7 = arith.constant -9.990000e-01 : f32
    %cst_8 = arith.constant 0.999899983 : f32
    %19 = vector.broadcast %cst_7 : f32 to vector<3x16x16xf32>
    %20 = arith.maximumf %19, %18 : vector<3x16x16xf32>
    %21 = vector.broadcast %cst_8 : f32 to vector<3x16x16xf32>
    %22 = arith.minimumf %21, %20 : vector<3x16x16xf32>
    %c0_9 = arith.constant 0 : index
    %c0_10 = arith.constant 0 : index
    %c0_11 = arith.constant 0 : index
    %c0_12 = arith.constant 0 : index
    %23 = vector.load %arg3[%c0_9, %c0_10, %c0_11, %c0_12] : memref<1x4x16x16xf32, #tpu.memory_space<vmem>>, vector<1x3x16x16xf32>
    %24 = vector.shape_cast %23 : vector<1x3x16x16xf32> to vector<3x16x16xf32>
    %25 = vector.shape_cast %22 : vector<3x16x16xf32> to vector<1x3x16x16xf32>
    tpu.vector_store %arg3[%c0_9, %c0_10, %c0_11, %c0_12], %25 {strides = array<i32>} : memref<1x4x16x16xf32, #tpu.memory_space<vmem>>, vector<1x3x16x16xf32>,
    %26 = vector.extract_strided_slice %1 {offsets = [3, 1, 1], sizes = [1, 16, 16], strides = [1, 1, 1]} : vector<4x18x18xf32> to vector<1x16x16xf32>
    %27 = vector.extract_strided_slice %3 {offsets = [3, 0, 0], sizes = [1, 16, 16], strides = [1, 1, 1]} : vector<4x16x16xf32> to vector<1x16x16xf32>
    %28 = arith.addf %26, %27 : vector<1x16x16xf32>
    %cst_13 = arith.constant -9.990000e-01 : f32
    %cst_14 = arith.constant 0.999899983 : f32
    %29 = vector.broadcast %cst_13 : f32 to vector<1x16x16xf32>
    %30 = arith.maximumf %29, %28 : vector<1x16x16xf32>
    %31 = vector.broadcast %cst_14 : f32 to vector<1x16x16xf32>
    %32 = arith.minimumf %31, %30 : vector<1x16x16xf32>
    %c0_15 = arith.constant 0 : index
    %c3 = arith.constant 3 : index
    %c0_16 = arith.constant 0 : index
    %c0_17 = arith.constant 0 : index
    %33 = vector.load %arg3[%c0_15, %c3, %c0_16, %c0_17] : memref<1x4x16x16xf32, #tpu.memory_space<vmem>>, vector<1x1x16x16xf32>
    %34 = vector.shape_cast %33 : vector<1x1x16x16xf32> to vector<1x16x16xf32>
    %35 = vector.shape_cast %32 : vector<1x16x16xf32> to vector<1x1x16x16xf32>
    tpu.vector_store %arg3[%c0_15, %c3, %c0_16, %c0_17], %35 {strides = array<i32>} : memref<1x4x16x16xf32, #tpu.memory_space<vmem>>, vector<1x1x16x16xf32>,
    return
  }
  func.func @transform_0(%arg0: i32) -> (i32, i32, i32, i32) {
    %c0_i32 = arith.constant 0 : i32
    %c0_i32_0 = arith.constant 0 : i32
    %c0_i32_1 = arith.constant 0 : i32
    %c0_i32_2 = arith.constant 0 : i32
    return %arg0, %c0_i32, %c0_i32_0, %c0_i32_1 : i32, i32, i32, i32
  }
  func.func @transform_1(%arg0: i32) -> (i32, i32, i32, i32) {
    %c0_i32 = arith.constant 0 : i32
    %c0_i32_0 = arith.constant 0 : i32
    %c0_i32_1 = arith.constant 0 : i32
    %c0_i32_2 = arith.constant 0 : i32
    return %arg0, %c0_i32, %c0_i32_0, %c0_i32_1 : i32, i32, i32, i32
  }
  func.func @transform_2(%arg0: i32) -> (i32, i32, i32, i32) {
    %c0_i32 = arith.constant 0 : i32
    %c0_i32_0 = arith.constant 0 : i32
    %c0_i32_1 = arith.constant 0 : i32
    %c0_i32_2 = arith.constant 0 : i32
    return %arg0, %c0_i32, %c0_i32_0, %c0_i32_1 : i32, i32, i32, i32
  }
}

</mosaic_0001>

<llo_original>
// kernel: tpu_custom_call.1
$region0: #{tpu_custom_call.1}
  #allocation0 [shape = 'u32[]', space=smem, size = 0x4, offset = 0x4, fixed_abs, tag = 'smem constant byte address 0x4 - core index']
  #allocation1 [shape = 'u32[144,128]{1,0:T(1,128)}', space=vmem, size = 0x12000, scoped, tag = 'internal scratch']
  %s0 = inlined_call_operand.vmem [shape: f32[2,4,18,18], index: 0, kind: input, shape index: {}]
  %s1 = inlined_call_operand.vmem [shape: f32[2,4,16,16], index: 1, kind: input, shape index: {}]
  %s2 = inlined_call_operand.hbm [shape: f32[2,4,16,16], index: 2, kind: output, shape index: {}]
  %s3 = sld [smem:[#allocation0]]
  $region41: #{tpu_custom_call.1} parent=0
    _
  %s5 = ssub.s32 1, %s3
  %s6 = scalar_select 0, %s5, %s3
  $region1: #{tpu_custom_call.1} parent=0
    #allocation2 [shape = 'u8[65536]{0}', space=vmem, size = 0x10000, scoped, tag = 'output window, operand 0']
    #allocation3 [shape = 's32[2]{0}', space=sflag, size = 0x8, scoped, tag = 'scoped memory for tpu_custom_call.1']
    %7 = vsyncpa [#allocation3], 0
    %s8 = scalar_lea.sflag [#allocation3], 1
    %9 = vsyncpa %s8, 0
    loop: start=0, step=1, limit=4
    $region2: #{tpu_custom_call.1} parent=1 // loop_pre_header
      _
    $region3: #{tpu_custom_call.1} parent=1 // loop_header
      %s11 = sphi 0, %s15
      %p12 = scmp.ge.s32.totalorder %s11, 4
      %s21 = sphi 0, %s23
      %s24 = sphi 0, %s21
      %s25 = sphi 0, %s24
      %s41 = sphi 0, %s25
      %s47 = sphi 0, %s49
      %s50 = sphi 0, %s47
      %s51 = sphi 0, %s50
      %s67 = sphi 0, %s51
      %s73 = sphi 0, %s75
      %s76 = sphi 0, %s73
      %s77 = sphi 0, %s76
      %s93 = sphi 0, %s77
    $region4: #{tpu_custom_call.1} parent=1 // loop_header_branch
      %14 = sbr.rel (%p12) target = $region8
    $region5: #{tpu_custom_call.1} parent=1 // loop_body
      %s16 = ssub.s32 %s11, 1
      %s17 = ssub.s32 %s11, 2
      %s18 = sadd.s32 %s11, 1
      %s19 = ssub.s32 %s11, %s18
      %p20 = scmp.eq.s32.totalorder %s19, 0
      %s22 = sadd.s32 %s21, 1
      %s23 = scalar_select %p20, %s21, %s22
      %p26 = pneg %p20
      %p27 = scmp.eq.s32.totalorder %s11, 1
      %p28 = por %p26, %p27
      %p29 = scmp.ne.s32.totalorder %s21, %s24
      %p30 = scmp.eq.s32.totalorder %s11, 0
      %p31 = por %p29, %p30
      %p32 = scmp.ne.s32.totalorder %s21, %s24
      %p33 = scmp.eq.s32.totalorder %s16, 1
      %p34 = por %p32, %p33
      %p35 = scmp.ne.s32.totalorder %s24, %s25
      %p36 = scmp.eq.s32.totalorder %s16, 0
      %p37 = por %p35, %p36
      %p38 = scmp.ne.s32.totalorder %s24, %s25
      %p39 = scmp.eq.s32.totalorder %s17, 1
      %p40 = por %p38, %p39
      %p42 = scmp.ne.s32.totalorder %s25, %s41
      %p43 = scmp.eq.s32.totalorder %s17, 0
      %p44 = por %p42, %p43
      %s45 = ssub.s32 %s11, %s18
      %p46 = scmp.eq.s32.totalorder %s45, 0
      %s48 = sadd.s32 %s47, 1
      %s49 = scalar_select %p46, %s47, %s48
      %p52 = pneg %p46
      %p53 = scmp.eq.s32.totalorder %s11, 1
      %p54 = por %p52, %p53
      %p55 = scmp.ne.s32.totalorder %s47, %s50
      %p56 = scmp.eq.s32.totalorder %s11, 0
      %p57 = por %p55, %p56
      %p58 = scmp.ne.s32.totalorder %s47, %s50
      %p59 = scmp.eq.s32.totalorder %s16, 1
      %p60 = por %p58, %p59
      %p61 = scmp.ne.s32.totalorder %s50, %s51
      %p62 = scmp.eq.s32.totalorder %s16, 0
      %p63 = por %p61, %p62
      %p64 = scmp.ne.s32.totalorder %s50, %s51
      %p65 = scmp.eq.s32.totalorder %s17, 1
      %p66 = por %p64, %p65
      %p68 = scmp.ne.s32.totalorder %s51, %s67
      %p69 = scmp.eq.s32.totalorder %s17, 0
      %p70 = por %p68, %p69
      %s71 = ssub.s32 %s11, %s18
      %p72 = scmp.eq.s32.totalorder %s71, 0
      %s74 = sadd.s32 %s73, 1
      %s75 = scalar_select %p72, %s73, %s74
      %p78 = pneg %p72
      %p79 = scmp.eq.s32.totalorder %s11, 1
      %p80 = por %p78, %p79
      %p81 = scmp.ne.s32.totalorder %s73, %s76
      %p82 = scmp.eq.s32.totalorder %s11, 0
      %p83 = por %p81, %p82
      %p84 = scmp.ne.s32.totalorder %s73, %s76
      %p85 = scmp.eq.s32.totalorder %s16, 1
      %p86 = por %p84, %p85
      %p87 = scmp.ne.s32.totalorder %s76, %s77
      %p88 = scmp.eq.s32.totalorder %s16, 0
      %p89 = por %p87, %p88
      %p90 = scmp.ne.s32.totalorder %s76, %s77
      %p91 = scmp.eq.s32.totalorder %s17, 1
      %p92 = por %p90, %p91
      %p94 = scmp.ne.s32.totalorder %s77, %s93
      %p95 = scmp.eq.s32.totalorder %s17, 0
      %p96 = por %p94, %p95
      %p97 = scmp.le.s32.totalorder 1, %s11
      %p98 = scmp.lt.s32.totalorder %s11, 3
      %p99 = pnand %p97, %p98
      %p100 = pneg %p99
      // Predicated region
      $region9: #{tpu_custom_call.1} parent=5 // pred_check
        _
      $region10: #{tpu_custom_call.1} parent=5 // pred_check_branch
        %102 = sbr.rel (%p99) target = $region12
      $region11: #{tpu_custom_call.1} parent=5 // pred_region
        %s103 = ssub.s32 %s11, 1
      $region12: #{tpu_custom_call.1} parent=5 // pred_fallthru
        _
      %p104 = scmp.lt.s32.totalorder %s11, 2
      // Predicated region
      $region13: #{tpu_custom_call.1} parent=5 // pred_check
        %p105 = pneg %p104
      $region14: #{tpu_custom_call.1} parent=5 // pred_check_branch
        %107 = sbr.rel (%p105) target = $region16
      $region15: #{tpu_custom_call.1} parent=5 // pred_region
        // Predicated region
        $region17: #{tpu_custom_call.1} parent=15 // pred_check
          %p108 = pneg %p31
        $region18: #{tpu_custom_call.1} parent=15 // pred_check_branch
          %110 = sbr.rel (%p108) target = $region20
        $region19: #{tpu_custom_call.1} parent=15 // pred_region
          %p111 = scmp.lt.s32.totalorder %s11, 1
          %s112 = scalar_select %p111, %s11, 1
          %s113 = smul.addr %s112, 12
          %s114 = smul.addr %s113, 8
          %s115 = scalar_lea.vmem %s0, %s114
        $region20: #{tpu_custom_call.1} parent=15 // pred_fallthru
          _
        // Predicated region
        $region21: #{tpu_custom_call.1} parent=15 // pred_check
          %p116 = pneg %p57
        $region22: #{tpu_custom_call.1} parent=15 // pred_check_branch
          %118 = sbr.rel (%p116) target = $region24
        $region23: #{tpu_custom_call.1} parent=15 // pred_region
          %p119 = scmp.lt.s32.totalorder %s11, 1
          %s120 = scalar_select %p119, %s11, 1
          %s121 = smul.addr %s120, 8
          %s122 = smul.addr %s121, 8
          %s123 = scalar_lea.vmem %s1, %s122
        $region24: #{tpu_custom_call.1} parent=15 // pred_fallthru
          _
      $region16: #{tpu_custom_call.1} parent=5 // pred_fallthru
        _
      %p124 = scmp.le.s32.totalorder 1, %s11
      %p125 = scmp.lt.s32.totalorder %s11, 3
      %p126 = pnand %p124, %p125
      %p127 = pneg %p126
      // Predicated region
      $region25: #{tpu_custom_call.1} parent=5 // pred_check
        _
      $region26: #{tpu_custom_call.1} parent=5 // pred_check_branch
        %129 = sbr.rel (%p126) target = $region28
      $region27: #{tpu_custom_call.1} parent=5 // pred_region
        %s130 = ssub.s32 %s11, 1
        %p131 = scmp.lt.s32.totalorder %s16, 1
        %s132 = scalar_select %p131, %s16, 1
        %s133 = smul.addr %s132, 12
        %s134 = smul.addr %s133, 8
        %s135 = scalar_lea.vmem %s0, %s134
        %p136 = pneg %p37
        %p137 = pneg %p34
        %p138 = scmp.lt.s32.totalorder %s16, 1
        %s139 = scalar_select %p138, %s16, 1
        %s140 = smul.addr %s139, 8
        %s141 = smul.addr %s140, 8
        %s142 = scalar_lea.vmem %s1, %s141
        %p143 = pneg %p63
        %p144 = pneg %p60
        %p145 = pneg %p89
        %p146 = pneg %p86
        %s147 = sand.u32 %s76, 1
        %s148 = scalar_lea.sflag [#allocation3], %s147
        %s149 = sand.u32 %s76, 1
        %s150 = smul.addr %s149, 64
        %s151 = scalar_lea.vmem [#allocation2], %s150
        %p152 = scmp.lt.s32.totalorder %s16, 1
        %s153 = scalar_select %p152, %s16, 1
        %s154 = smul.addr %s153, 12
        %s155 = smul.addr %s154, 8
        %s156 = scalar_lea.vmem %s0, %s155
        %p157 = scmp.lt.s32.totalorder %s16, 1
        %s158 = scalar_select %p157, %s16, 1
        %s159 = smul.addr %s158, 8
        %s160 = smul.addr %s159, 8
        %s161 = scalar_lea.vmem %s1, %s160
        %v162 = vld [vmem:[%s156] sm:$0xff]
        %v163 = vld [vmem:[%s156 + $0x8] sm:$0xff]
        %v164 = vld [vmem:[%s156 + $0x10] sm:$0x3]
        %v165 = vld [vmem:[%s156 + $0x18] sm:$0xff]
        %v166 = vld [vmem:[%s156 + $0x20] sm:$0xff]
        %v167 = vld [vmem:[%s156 + $0x28] sm:$0x3]
        %v168 = vld [vmem:[%s156 + $0x30] sm:$0xff]
        %v169 = vld [vmem:[%s156 + $0x38] sm:$0xff]
        %v170 = vld [vmem:[%s156 + $0x40] sm:$0x3]
        %v171 = vld [vmem:[%s156 + $0x48] sm:$0xff]
        %v172 = vld [vmem:[%s156 + $0x50] sm:$0xff]
        %v173 = vld [vmem:[%s156 + $0x58] sm:$0x3]
        %v174 = vld [vmem:[%s161] sm:$0xff]
        %v175 = vld [vmem:[%s161 + $0x8] sm:$0xff]
        %v176 = vld [vmem:[%s161 + $0x10] sm:$0xff]
        %v177 = vld [vmem:[%s161 + $0x18] sm:$0xff]
        %v178 = vld [vmem:[%s161 + $0x20] sm:$0xff]
        %v179 = vld [vmem:[%s161 + $0x28] sm:$0xff]
        %v180 = vld [vmem:[%s161 + $0x30] sm:$0xff]
        %v181 = vld [vmem:[%s161 + $0x38] sm:$0xff]
        %191 = vrot.lane.b32.xlu0 %v162, 127
        %v192 = vpop.permute.xlu0 %191
        %193 = vrot.lane.b32.xlu0 %v163, 127
        %v194 = vpop.permute.xlu0 %193
        %195 = vrot.lane.b32.xlu0 %v164, 127
        %v196 = vpop.permute.xlu0 %195
        %197 = vrot.lane.b32.xlu0 %v165, 127
        %v198 = vpop.permute.xlu0 %197
        %199 = vrot.lane.b32.xlu0 %v166, 127
        %v200 = vpop.permute.xlu0 %199
        %201 = vrot.lane.b32.xlu0 %v167, 127
        %v202 = vpop.permute.xlu0 %201
        %203 = vrot.lane.b32.xlu0 %v168, 127
        %v204 = vpop.permute.xlu0 %203
        %205 = vrot.lane.b32.xlu0 %v169, 127
        %v206 = vpop.permute.xlu0 %205
        %207 = vrot.lane.b32.xlu0 %v170, 127
        %v208 = vpop.permute.xlu0 %207
        %v218 = vadd.f32 %v162, %v192
        %v219 = vadd.f32 %v163, %v194
        %v220 = vadd.f32 %v164, %v196
        %v221 = vadd.f32 %v165, %v198
        %v222 = vadd.f32 %v166, %v200
        %v223 = vadd.f32 %v167, %v202
        %v224 = vadd.f32 %v168, %v204
        %v225 = vadd.f32 %v169, %v206
        %v226 = vadd.f32 %v170, %v208
        %227 = vrot.lane.b32.xlu0 %v162, 126
        %v228 = vpop.permute.xlu0 %227
        %229 = vrot.lane.b32.xlu0 %v163, 126
        %v230 = vpop.permute.xlu0 %229
        %231 = vrot.lane.b32.xlu0 %v164, 126
        %v232 = vpop.permute.xlu0 %231
        %233 = vrot.lane.b32.xlu0 %v165, 126
        %v234 = vpop.permute.xlu0 %233
        %235 = vrot.lane.b32.xlu0 %v166, 126
        %v236 = vpop.permute.xlu0 %235
        %237 = vrot.lane.b32.xlu0 %v167, 126
        %v238 = vpop.permute.xlu0 %237
        %239 = vrot.lane.b32.xlu0 %v168, 126
        %v240 = vpop.permute.xlu0 %239
        %241 = vrot.lane.b32.xlu0 %v169, 126
        %v242 = vpop.permute.xlu0 %241
        %243 = vrot.lane.b32.xlu0 %v170, 126
        %v244 = vpop.permute.xlu0 %243
        %v254 = vadd.f32 %v218, %v228
        %v255 = vadd.f32 %v219, %v230
        %v256 = vadd.f32 %v220, %v232
        %v257 = vadd.f32 %v221, %v234
        %v258 = vadd.f32 %v222, %v236
        %v259 = vadd.f32 %v223, %v238
        %v260 = vadd.f32 %v224, %v240
        %v261 = vadd.f32 %v225, %v242
        %v262 = vadd.f32 %v226, %v244
        %vm272 = vcmask 1046528
        %v273 = vrot.slane %v254, 1
        %v274 = vrot.slane %v255, 1
        %v275 = vsel %vm272, %v273, %v274
        %v276 = vrot.slane %v256, 1
        %v277 = vsel %vm272, %v274, %v276
        %v278 = vrot.slane %v257, 1
        %v279 = vrot.slane %v258, 1
        %v280 = vsel %vm272, %v278, %v279
        %v281 = vrot.slane %v259, 1
        %v282 = vsel %vm272, %v279, %v281
        %v283 = vrot.slane %v260, 1
        %v284 = vrot.slane %v261, 1
        %v285 = vsel %vm272, %v283, %v284
        %v286 = vrot.slane %v262, 1
        %v287 = vsel %vm272, %v284, %v286
        %v294 = vadd.f32 %v254, %v275
        %v295 = vadd.f32 %v255, %v277
        %v296 = vadd.f32 %v257, %v280
        %v297 = vadd.f32 %v258, %v282
        %v298 = vadd.f32 %v260, %v285
        %v299 = vadd.f32 %v261, %v287
        %vm300 = vcmask 1045504
        %v301 = vrot.slane %v254, 2
        %v302 = vrot.slane %v255, 2
        %v303 = vsel %vm300, %v301, %v302
        %v304 = vrot.slane %v256, 2
        %v305 = vsel %vm300, %v302, %v304
        %v306 = vrot.slane %v257, 2
        %v307 = vrot.slane %v258, 2
        %v308 = vsel %vm300, %v306, %v307
        %v309 = vrot.slane %v259, 2
        %v310 = vsel %vm300, %v307, %v309
        %v311 = vrot.slane %v260, 2
        %v312 = vrot.slane %v261, 2
        %v313 = vsel %vm300, %v311, %v312
        %v314 = vrot.slane %v262, 2
        %v315 = vsel %vm300, %v312, %v314
        %v322 = vadd.f32 %v294, %v303
        %v323 = vadd.f32 %v295, %v305
        %v324 = vadd.f32 %v296, %v308
        %v325 = vadd.f32 %v297, %v310
        %v326 = vadd.f32 %v298, %v313
        %v327 = vadd.f32 %v299, %v315
        %v328 = vmul.f32 %v322, 0.11111111
        %v329 = vmul.f32 %v323, 0.11111111
        %v330 = vmul.f32 %v324, 0.11111111
        %v331 = vmul.f32 %v325, 0.11111111
        %v332 = vmul.f32 %v326, 0.11111111
        %v333 = vmul.f32 %v327, 0.11111111
        %v334 = vadd.f32 %v328, %v174
        %v335 = vadd.f32 %v329, %v175
        %v336 = vadd.f32 %v330, %v176
        %v337 = vadd.f32 %v331, %v177
        %v338 = vadd.f32 %v332, %v178
        %v339 = vadd.f32 %v333, %v179
        %v340 = vmax.f32 %v334, -0.999
        %v341 = vmax.f32 %v335, -0.999
        %v342 = vmax.f32 %v336, -0.999
        %v343 = vmax.f32 %v337, -0.999
        %v344 = vmax.f32 %v338, -0.999
        %v345 = vmax.f32 %v339, -0.999
        %v346 = vmin.f32 %v340, 0.9999
        %v347 = vmin.f32 %v341, 0.9999
        %v348 = vmin.f32 %v342, 0.9999
        %v349 = vmin.f32 %v343, 0.9999
        %v350 = vmin.f32 %v344, 0.9999
        %v351 = vmin.f32 %v345, 0.9999
        %vm352 = vcmask 130048
        %353 = vst.msk [vmem:[%s151] sm:$0xff] %vm352, %v346
        %354 = vst.msk [vmem:[%s151 + $0x8] sm:$0xff] %vm352, %v347
        %355 = vst.msk [vmem:[%s151 + $0x10] sm:$0xff] %vm352, %v348
        %356 = vst.msk [vmem:[%s151 + $0x18] sm:$0xff] %vm352, %v349
        %357 = vst.msk [vmem:[%s151 + $0x20] sm:$0xff] %vm352, %v350
        %358 = vst.msk [vmem:[%s151 + $0x28] sm:$0xff] %vm352, %v351
        %vm361 = vcmask 1040384
        %v362 = vrot.slane %v180, 7
        %v363 = vrot.slane %v181, 7
        %v364 = vsel %vm361, %v362, %v363
        %365 = vrot.lane.b32.xlu0 %v362, 1
        %v366 = vpop.permute.xlu0 %365
        %367 = vrot.lane.b32.xlu0 %v364, 1
        %v368 = vpop.permute.xlu0 %367
        %369 = vrot.lane.b32.xlu0 %v363, 1
        %v370 = vpop.permute.xlu0 %369
        %v374 = vadd.f32 %v171, %v366
        %v375 = vadd.f32 %v172, %v368
        %v376 = vadd.f32 %v173, %v370
        %v377 = vmax.f32 %v374, -0.999
        %v378 = vmax.f32 %v375, -0.999
        %v379 = vmax.f32 %v376, -0.999
        %v380 = vmin.f32 %v377, 0.9999
        %v381 = vmin.f32 %v378, 0.9999
        %v382 = vmin.f32 %v379, 0.9999
        %386 = vrot.lane.b32.xlu0 %v380, 127
        %v387 = vpop.permute.xlu0 %386
        %388 = vrot.lane.b32.xlu0 %v381, 127
        %v389 = vpop.permute.xlu0 %388
        %390 = vrot.lane.b32.xlu0 %v382, 127
        %v391 = vpop.permute.xlu0 %390
        %s395 = scalar_lea.vmem %s151, 48 [#allocation2]
        %vm396 = vcmask 130049
        %397 = vst.msk [vmem:[%s395 - $0x1] sm:$0xfe] %vm396, %v387
        %398 = vst.msk [vmem:[%s395 + $0x7] sm:$0xff] %vm352, %v389
        %vm399 = vcmask 122880
        %400 = vst.msk [vmem:[%s395 + $0xf] sm:$0x1] %vm399, %v391
        %s401 = sand.u32 %s76, 1
        %s402 = scalar_lea.sflag [#allocation3], %s401
        %s403 = sand.u32 %s76, 1
        %s404 = smul.addr %s403, 64
        %s405 = scalar_lea.vmem [#allocation2], %s404
        // Predicated region
        $region29: #{tpu_custom_call.1} parent=27 // pred_check
          %p406 = pneg %p86
        $region30: #{tpu_custom_call.1} parent=27 // pred_check_branch
          %408 = sbr.rel (%p406) target = $region32
        $region31: #{tpu_custom_call.1} parent=27 // pred_region
          %s410 = ssub.s32 1024, 1024
          %411 = vsyncadd %s402, %s410
          %s412 = smul.addr %s16, 8
          %s413 = smul.addr %s412, 128
          %s414 = scalar_lea.hbm %s2, %s413
          %s415 = sshll.u32 %s405, 4
          %s416 = int_to_ptr.vmem [resolvable:$true] %s415
          %421 = dma.vmem_to_hbm [thread:$0]  %s416, 1024, %s414, %s402, 128, 128, 8
        $region32: #{tpu_custom_call.1} parent=27 // pred_fallthru
          _
      $region28: #{tpu_custom_call.1} parent=5 // pred_fallthru
        _
      %p422 = scmp.le.s32.totalorder 2, %s11
      // Predicated region
      $region33: #{tpu_custom_call.1} parent=5 // pred_check
        %p423 = pneg %p422
      $region34: #{tpu_custom_call.1} parent=5 // pred_check_branch
        %425 = sbr.rel (%p423) target = $region36
      $region35: #{tpu_custom_call.1} parent=5 // pred_region
        %s426 = ssub.s32 %s11, 2
        // Predicated region
        $region37: #{tpu_custom_call.1} parent=35 // pred_check
          %p427 = pneg %p92
        $region38: #{tpu_custom_call.1} parent=35 // pred_check_branch
          %429 = sbr.rel (%p427) target = $region40
        $region39: #{tpu_custom_call.1} parent=35 // pred_region
          %s430 = sand.u32 %s77, 1
          %s431 = scalar_lea.sflag [#allocation3], %s430
          %s432 = sand.u32 %s77, 1
          %s433 = smul.addr %s432, 64
          %s434 = scalar_lea.vmem [#allocation2], %s433
          %435 = dma.done %s431, 1024
        $region40: #{tpu_custom_call.1} parent=35 // pred_fallthru
          _
      $region36: #{tpu_custom_call.1} parent=5 // pred_fallthru
        _
    $region6: #{tpu_custom_call.1} parent=1 // loop_footer
      %s15 = sadd.s32 1, %s11
    $region7: #{tpu_custom_call.1} parent=1 // loop_footer_branch
      %10 = sbr.rel target = $region3
    $region8: #{tpu_custom_call.1} parent=1 // loop_exit
      _
    %436 = vsyncpa [#allocation3], 1
    %s437 = scalar_lea.sflag [#allocation3], 1
    %438 = vsyncpa %s437, 1

</llo_original>
